<compile_context>
chip_gen: v7x
topology: tpu7x:2x2x1
jax: 0.10.0
libtpu: 0.0.40
codegen_flags: <defaults>
</compile_context>

<pallas_src>
import functools

import jax
import jax.numpy as jnp
import numpy as np
from jax.experimental import pallas as pl
from jax.experimental.pallas import tpu as pltpu

EPS = 1e-5
_DEFAULT_VMEM = 64 * 1024 * 1024  # conservative default = v7x physical VMEM per TensorCore


def _vmem_capacity_bytes():
    try:
        return int(pltpu.get_tpu_info().vmem_capacity_bytes)
    except Exception:  # interpret mode / older jax — fall back to the smallest generation
        return _DEFAULT_VMEM


def _compiler_params():
    cap = _vmem_capacity_bytes()
    return pltpu.CompilerParams(
        dimension_semantics=("parallel", "arbitrary", "arbitrary"),
        vmem_limit_bytes=int(min(cap, 128 * 1024 * 1024) * 3 // 4),
    )


def _channel_block(cout):
    # TODO(synk): prefer bc=128 on v5e (4x128x128 MXU); 256 matches the v6e/v7x 2x256 granule.
    if cout % 256 == 0:
        bc = 256
    elif cout % 128 == 0:
        bc = 128
    else:
        return cout
    if cout // bc == 1 and bc == 256:
        bc = 128  # keep >= 2 steps on the "parallel" axis so both v7x TensorCores are busy
    return bc


def _m_block(m, bf16_rows, f32_rows, bc, cap=8192):
    """Largest lane tile (multiple of 128 dividing m, or m itself) under the VMEM budget."""
    if m % 128 != 0:
        return m  # lane axis must be taken whole if it is not 128-aligned
    budget = int(_vmem_capacity_bytes() * 0.6)  # leave headroom for compiler scratch

    def fits(bm):
        use = (2 * bf16_rows * bm * 2        # bf16 matmul operand tiles (double-buffered)
               + 2 * f32_rows * bm * 4       # f32 shortcut tile (double-buffered)
               + 2 * bc * bm * 4             # output tile, f32 upper bound (double-buffered)
               + 2 * bc * bf16_rows * 2      # weight tiles
               + 8 * bc * 512)               # per-channel params + stats scratch (lane-padded)
        return use <= budget

    best = None
    bm = 128
    limit = min(m, cap)
    while bm <= limit:
        if m % bm == 0 and fits(bm):
            best = bm
        bm += 128
    return best if best is not None else 128


# --------------------------------------------------------------------------------------
# Pallas kernels (transposed layout: rows = output channels, lanes = M = N*Ho*Wo)
# Grid = (channel block j, pass p in {0: stats, 1: apply}, M tile mi).
# --------------------------------------------------------------------------------------

def _conv_bn_relu_kernel(p_ref, w_ref, g_ref, b_ref, o_ref, sum_ref, sq_ref, *, inv_m):
    """Pass 0: accumulate BN stats of W @ P over M tiles.  Pass 1: relu(batchnorm(W @ P))."""
    pass_idx = pl.program_id(1)
    mi = pl.program_id(2)
    acc = jnp.dot(w_ref[...], p_ref[...], preferred_element_type=jnp.float32)  # (bc, bm) f32

    @pl.when(jnp.logical_and(pass_idx == 0, mi == 0))
    def _():
        sum_ref[...] = jnp.zeros_like(sum_ref)
        sq_ref[...] = jnp.zeros_like(sq_ref)
        o_ref[...] = jnp.zeros_like(o_ref)  # deterministic content for the resident block

    @pl.when(pass_idx == 0)
    def _():
        sum_ref[...] += jnp.sum(acc, axis=1, keepdims=True)
        sq_ref[...] += jnp.sum(acc * acc, axis=1, keepdims=True)

    @pl.when(pass_idx == 1)
    def _():
        mean = sum_ref[...] * inv_m
        var = jnp.maximum(sq_ref[...] * inv_m - mean * mean, 0.0)  # clamp cancellation
        scale = g_ref[...] * jax.lax.rsqrt(var + EPS)
        shift = b_ref[...] - mean * scale
        o_ref[...] = jnp.maximum(acc * scale + shift, 0.0).astype(o_ref.dtype)


def _conv_bn_add_relu_id_kernel(p_ref, w_ref, g_ref, b_ref, x_ref, o_ref,
                                sum_ref, sq_ref, *, inv_m):
    """relu(batchnorm(W @ P) + x)  with identity shortcut, two-pass BN over M tiles."""
    pass_idx = pl.program_id(1)
    mi = pl.program_id(2)
    acc = jnp.dot(w_ref[...], p_ref[...], preferred_element_type=jnp.float32)

    @pl.when(jnp.logical_and(pass_idx == 0, mi == 0))
    def _():
        sum_ref[...] = jnp.zeros_like(sum_ref)
        sq_ref[...] = jnp.zeros_like(sq_ref)
        o_ref[...] = jnp.zeros_like(o_ref)

    @pl.when(pass_idx == 0)
    def _():
        sum_ref[...] += jnp.sum(acc, axis=1, keepdims=True)
        sq_ref[...] += jnp.sum(acc * acc, axis=1, keepdims=True)

    @pl.when(pass_idx == 1)
    def _():
        mean = sum_ref[...] * inv_m
        var = jnp.maximum(sq_ref[...] * inv_m - mean * mean, 0.0)
        scale = g_ref[...] * jax.lax.rsqrt(var + EPS)
        h2 = acc * scale + (b_ref[...] - mean * scale)
        o_ref[...] = jnp.maximum(h2 + x_ref[...].astype(jnp.float32), 0.0).astype(o_ref.dtype)


def _conv_bn_add_relu_proj_kernel(p_ref, w_ref, g_ref, b_ref,
                                  xs_ref, ws_ref, gs_ref, bs_ref, o_ref,
                                  sum_ref, sq_ref, ssum_ref, ssq_ref, *, inv_m):
    """relu(batchnorm(W @ P) + batchnorm(Ws @ Xs))  (1x1-conv projection shortcut)."""
    pass_idx = pl.program_id(1)
    mi = pl.program_id(2)
    acc = jnp.dot(w_ref[...], p_ref[...], preferred_element_type=jnp.float32)
    sc = jnp.dot(ws_ref[...], xs_ref[...], preferred_element_type=jnp.float32)

    @pl.when(jnp.logical_and(pass_idx == 0, mi == 0))
    def _():
        sum_ref[...] = jnp.zeros_like(sum_ref)
        sq_ref[...] = jnp.zeros_like(sq_ref)
        ssum_ref[...] = jnp.zeros_like(ssum_ref)
        ssq_ref[...] = jnp.zeros_like(ssq_ref)
        o_ref[...] = jnp.zeros_like(o_ref)

    @pl.when(pass_idx == 0)
    def _():
        sum_ref[...] += jnp.sum(acc, axis=1, keepdims=True)
        sq_ref[...] += jnp.sum(acc * acc, axis=1, keepdims=True)
        ssum_ref[...] += jnp.sum(sc, axis=1, keepdims=True)
        ssq_ref[...] += jnp.sum(sc * sc, axis=1, keepdims=True)

    @pl.when(pass_idx == 1)
    def _():
        mean = sum_ref[...] * inv_m
        var = jnp.maximum(sq_ref[...] * inv_m - mean * mean, 0.0)
        scale = g_ref[...] * jax.lax.rsqrt(var + EPS)
        h2 = acc * scale + (b_ref[...] - mean * scale)

        ms = ssum_ref[...] * inv_m
        vs = jnp.maximum(ssq_ref[...] * inv_m - ms * ms, 0.0)
        ss = gs_ref[...] * jax.lax.rsqrt(vs + EPS)
        s2 = sc * ss + (bs_ref[...] - ms * ss)

        o_ref[...] = jnp.maximum(h2 + s2, 0.0).astype(o_ref.dtype)


# --------------------------------------------------------------------------------------
# pallas_call wrappers
# --------------------------------------------------------------------------------------

def _conv_bn_relu(p_t, w_t, g, b, out_dtype):
    k, m = p_t.shape
    cout = w_t.shape[0]
    bc = _channel_block(cout)
    bm = _m_block(m, bf16_rows=k, f32_rows=0, bc=bc)
    kern = functools.partial(_conv_bn_relu_kernel, inv_m=1.0 / m)
    return pl.pallas_call(
        kern,
        out_shape=jax.ShapeDtypeStruct((cout, m), out_dtype),
        grid=(cout // bc, 2, m // bm),
        in_specs=[pl.BlockSpec((k, bm), lambda j, p, mi: (0, mi)),
                  pl.BlockSpec((bc, k), lambda j, p, mi: (j, 0)),
                  pl.BlockSpec((bc, 1), lambda j, p, mi: (j, 0)),
                  pl.BlockSpec((bc, 1), lambda j, p, mi: (j, 0))],
        # mi*p keeps the output block resident (index (j,0)) during the stats pass, so the
        # pass-0 sweep causes no extra HBM writeback of the intermediate.
        out_specs=pl.BlockSpec((bc, bm), lambda j, p, mi: (j, mi * p)),
        scratch_shapes=[pltpu.VMEM((bc, 1), jnp.float32),
                        pltpu.VMEM((bc, 1), jnp.float32)],
        compiler_params=_compiler_params(),
    )(p_t, w_t, g, b)


def _conv_bn_add_relu_id(p_t, w_t, g, b, x_t):
    k, m = p_t.shape
    cout = w_t.shape[0]
    bc = _channel_block(cout)
    bm = _m_block(m, bf16_rows=k, f32_rows=bc, bc=bc)
    kern = functools.partial(_conv_bn_add_relu_id_kernel, inv_m=1.0 / m)
    return pl.pallas_call(
        kern,
        out_shape=jax.ShapeDtypeStruct((cout, m), jnp.float32),
        grid=(cout // bc, 2, m // bm),
        in_specs=[pl.BlockSpec((k, bm), lambda j, p, mi: (0, mi)),
                  pl.BlockSpec((bc, k), lambda j, p, mi: (j, 0)),
                  pl.BlockSpec((bc, 1), lambda j, p, mi: (j, 0)),
                  pl.BlockSpec((bc, 1), lambda j, p, mi: (j, 0)),
                  # shortcut is only needed in pass 1; keep its block index fixed in pass 0
                  pl.BlockSpec((bc, bm), lambda j, p, mi: (j, mi * p))],
        out_specs=pl.BlockSpec((bc, bm), lambda j, p, mi: (j, mi * p)),
        scratch_shapes=[pltpu.VMEM((bc, 1), jnp.float32),
                        pltpu.VMEM((bc, 1), jnp.float32)],
        compiler_params=_compiler_params(),
    )(p_t, w_t, g, b, x_t)


def _conv_bn_add_relu_proj(p_t, w_t, g, b, xs_t, ws_t, gs, bs):
    k, m = p_t.shape
    cout = w_t.shape[0]
    cin = ws_t.shape[1]
    bc = _channel_block(cout)
    bm = _m_block(m, bf16_rows=k + cin, f32_rows=0, bc=bc)
    kern = functools.partial(_conv_bn_add_relu_proj_kernel, inv_m=1.0 / m)
    return pl.pallas_call(
        kern,
        out_shape=jax.ShapeDtypeStruct((cout, m), jnp.float32),
        grid=(cout // bc, 2, m // bm),
        in_specs=[pl.BlockSpec((k, bm), lambda j, p, mi: (0, mi)),
                  pl.BlockSpec((bc, k), lambda j, p, mi: (j, 0)),
                  pl.BlockSpec((bc, 1), lambda j, p, mi: (j, 0)),
                  pl.BlockSpec((bc, 1), lambda j, p, mi: (j, 0)),
                  pl.BlockSpec((cin, bm), lambda j, p, mi: (0, mi)),
                  pl.BlockSpec((bc, cin), lambda j, p, mi: (j, 0)),
                  pl.BlockSpec((bc, 1), lambda j, p, mi: (j, 0)),
                  pl.BlockSpec((bc, 1), lambda j, p, mi: (j, 0))],
        out_specs=pl.BlockSpec((bc, bm), lambda j, p, mi: (j, mi * p)),
        scratch_shapes=[pltpu.VMEM((bc, 1), jnp.float32),
                        pltpu.VMEM((bc, 1), jnp.float32),
                        pltpu.VMEM((bc, 1), jnp.float32),
                        pltpu.VMEM((bc, 1), jnp.float32)],
        compiler_params=_compiler_params(),
    )(p_t, w_t, g, b, xs_t, ws_t, gs, bs)


# --------------------------------------------------------------------------------------
# XLA-side layout glue (im2col, transposes, dtype casts)
# TODO(synk): replace with in-kernel 9-tap accumulation on channel-major padded activations
#             to eliminate the 9x patch duplication and the full-array transposes in HBM.
# --------------------------------------------------------------------------------------

def _im2col(x_nhwc, ksize, stride, pad):
    """(N,H,W,C) -> (N*Ho*Wo, ksize*ksize*C) patch matrix (tap-major, channel-fast)."""
    n, h, w, c = x_nhwc.shape
    ho = (h + 2 * pad - ksize) // stride + 1
    wo = (w + 2 * pad - ksize) // stride + 1
    xp = jnp.pad(x_nhwc, ((0, 0), (pad, pad), (pad, pad), (0, 0)))
    taps = []
    for dy in range(ksize):
        for dx in range(ksize):
            taps.append(xp[:, dy:dy + (ho - 1) * stride + 1:stride,
                           dx:dx + (wo - 1) * stride + 1:stride, :])
    patches = jnp.concatenate(taps, axis=-1).reshape(n * ho * wo, ksize * ksize * c)
    return patches, ho, wo


def residual_block_pallas(x_nchw, params, stride, matmul_dtype=jnp.bfloat16):
    n, cin, h, w = x_nchw.shape
    cout = params['w1'].shape[0]
    use_proj = 'ws' in params

    x = jnp.transpose(x_nchw, (0, 2, 3, 1)).astype(jnp.float32)            # NHWC

    # conv1 im2col -> transposed patch matrix (9*Cin, M), M on the 128-lane axis.
    p1, ho, wo = _im2col(x, 3, stride, 1)
    m = n * ho * wo
    p1_t = p1.T.astype(matmul_dtype)
    w1_t = jnp.transpose(params['w1'], (0, 2, 3, 1)).reshape(cout, 9 * cin).astype(matmul_dtype)
    g1 = params['g1'].reshape(cout, 1).astype(jnp.float32)
    b1 = params['b1'].reshape(cout, 1).astype(jnp.float32)

    # h1 is emitted directly in matmul_dtype (bf16) to halve the inter-conv HBM traffic.
    h1_t = _conv_bn_relu(p1_t, w1_t, g1, b1, out_dtype=matmul_dtype)        # (Cout, M)

    # conv2 im2col on the intermediate activation (stride 1, pad 1), stays in matmul_dtype.
    h1 = h1_t.T.reshape(n, ho, wo, cout)
    p2, _, _ = _im2col(h1, 3, 1, 1)
    p2_t = p2.T
    w2_t = jnp.transpose(params['w2'], (0, 2, 3, 1)).reshape(cout, 9 * cout).astype(matmul_dtype)
    g2 = params['g2'].reshape(cout, 1).astype(jnp.float32)
    b2 = params['b2'].reshape(cout, 1).astype(jnp.float32)

    if use_proj:
        # 1x1 strided conv shortcut: pick the same strided center pixels as the main path.
        xs = x[:, :(ho - 1) * stride + 1:stride, :(wo - 1) * stride + 1:stride, :]
        xs_t = xs.reshape(m, cin).T.astype(matmul_dtype)                    # (Cin, M)
        ws_t = params['ws'].reshape(cout, cin).astype(matmul_dtype)
        gs = params['gs'].reshape(cout, 1).astype(jnp.float32)
        bs = params['bs'].reshape(cout, 1).astype(jnp.float32)
        out_t = _conv_bn_add_relu_proj(p2_t, w2_t, g2, b2, xs_t, ws_t, gs, bs)
    else:
        x_t = x.reshape(m, cout).T                                          # identity shortcut, f32
        out_t = _conv_bn_add_relu_id(p2_t, w2_t, g2, b2, x_t)

    # (Cout, N*Ho*Wo) lane-dense kernel output -> NCHW.
    return jnp.transpose(out_t.reshape(cout, n, ho, wo), (1, 0, 2, 3))


# --------------------------------------------------------------------------------------
# Parameters and pure-JAX reference (mirrors the PyTorch forward, training-mode BN)
# --------------------------------------------------------------------------------------

def init_params(key, cin, cout, stride):
    """Deterministic synthetic parameters matching the PyTorch module's shapes."""
    k1, k2, k3 = jax.random.split(key, 3)
    params = {
        'w1': 0.1 * jax.random.normal(k1, (cout, cin, 3, 3), jnp.float32),   # OIHW
        'g1': jnp.ones((cout,), jnp.float32), 'b1': jnp.zeros((cout,), jnp.float32),
        'w2': 0.1 * jax.random.normal(k2, (cout, cout, 3, 3), jnp.float32),  # OIHW
        'g2': jnp.ones((cout,), jnp.float32), 'b2': jnp.zeros((cout,), jnp.float32),
    }
    if stride != 1 or cin != cout:
        params['ws'] = 0.1 * jax.random.normal(k3, (cout, cin, 1, 1), jnp.float32)
        params['gs'] = jnp.ones((cout,), jnp.float32)
        params['bs'] = jnp.zeros((cout,), jnp.float32)
    return params


def residual_block_ref(x, params, stride):
    def conv(x, w, s, p):
        return jax.lax.conv_general_dilated(
            x, w, (s, s), ((p, p), (p, p)),
            dimension_numbers=('NCHW', 'OIHW', 'NCHW'),
            precision=jax.lax.Precision.HIGHEST)

    def bn(x, g, b):
        m = jnp.mean(x, axis=(0, 2, 3), keepdims=True)
        v = jnp.mean((x - m) ** 2, axis=(0, 2, 3), keepdims=True)
        return (x - m) / jnp.sqrt(v + EPS) * g.reshape(1, -1, 1, 1) + b.reshape(1, -1, 1, 1)

    out = jax.nn.relu(bn(conv(x, params['w1'], stride, 1), params['g1'], params['b1']))
    out = bn(conv(out, params['w2'], 1, 1), params['g2'], params['b2'])
    if 'ws' in params:
        sc = bn(conv(x, params['ws'], stride, 0), params['gs'], params['bs'])
    else:
        sc = x
    return jax.nn.relu(out + sc)


if __name__ == "__main__":
    key = jax.random.PRNGKey(0)
    kx1, kx2, kp1, kp2 = jax.random.split(key, 4)

    # Kernel uses bf16 matmul inputs / bf16 h1 (f32 accumulation and BN) while the reference
    # is f32 with HIGHEST precision, hence the modest tolerances below.

    # Case 1: projection shortcut (stride=2, 4 -> 8 channels)
    x1 = jax.random.normal(kx1, (2, 4, 16, 16), jnp.float32)
    p1 = init_params(kp1, 4, 8, 2)
    y1 = jax.block_until_ready(residual_block_pallas(x1, p1, 2))
    r1 = residual_block_ref(x1, p1, 2)
    np.testing.assert_allclose(np.asarray(y1), np.asarray(r1), rtol=5e-2, atol=1e-1)

    # Case 2: identity shortcut (stride=1, 8 -> 8 channels)
    x2 = jax.random.normal(kx2, (2, 8, 16, 16), jnp.float32)
    p2 = init_params(kp2, 8, 8, 1)
    y2 = jax.block_until_ready(residual_block_pallas(x2, p2, 1))
    r2 = residual_block_ref(x2, p2, 1)
    np.testing.assert_allclose(np.asarray(y2), np.asarray(r2), rtol=5e-2, atol=1e-1)

    print("KERNEL_OK")
</pallas_src>

<mosaic_0001>
module attributes {stable_mosaic.version = 11 : i64} {
  func.func @_conv_bn_relu_kernel(%arg0: i32, %arg1: i32, %arg2: i32, %arg3: memref<36x128xbf16, #tpu.memory_space<vmem>>, %arg4: memref<8x36xbf16, #tpu.memory_space<vmem>>, %arg5: memref<8x1xf32, #tpu.memory_space<vmem>>, %arg6: memref<8x1xf32, #tpu.memory_space<vmem>>, %arg7: memref<8x128xbf16, #tpu.memory_space<vmem>>, %arg8: memref<8x1xf32, #tpu.memory_space<vmem>>, %arg9: memref<8x1xf32, #tpu.memory_space<vmem>>) attributes {dimension_semantics = [#tpu.dimension_semantics<parallel>, #tpu.dimension_semantics<arbitrary>, #tpu.dimension_semantics<arbitrary>], iteration_bounds = array<i64: 1, 2, 1>, scalar_prefetch = 0 : i64, scratch_operands = 2 : i64, tpu.core_type = #tpu.core_type<tc>, window_params = [{transform_indices = @transform_0, window_bounds = array<i64: 36, 128>}, {transform_indices = @transform_1, window_bounds = array<i64: 8, 36>}, {transform_indices = @transform_2, window_bounds = array<i64: 8, 1>}, {transform_indices = @transform_3, window_bounds = array<i64: 8, 1>}, {transform_indices = @transform_4, window_bounds = array<i64: 8, 128>}]} {
    %c0 = arith.constant 0 : index
    %c0_0 = arith.constant 0 : index
    %0 = vector.load %arg4[%c0, %c0_0] : memref<8x36xbf16, #tpu.memory_space<vmem>>, vector<8x36xbf16>
    %c0_1 = arith.constant 0 : index
    %c0_2 = arith.constant 0 : index
    %1 = vector.load %arg3[%c0_1, %c0_2] : memref<36x128xbf16, #tpu.memory_space<vmem>>, vector<36x128xbf16>
    %cst = arith.constant dense<0.000000e+00> : vector<8x128xf32>
    %2 = tpu.matmul %0, %1, %cst {dimension_numbers = #tpu.dot_dimension_numbers<[1], [0], [0], [1], [0, 0, 1, 1], [], []>} : vector<8x36xbf16>, vector<36x128xbf16>, vector<8x128xf32> -> vector<8x128xf32>
    %c0_i32 = arith.constant 0 : i32
    %3 = arith.cmpi eq, %arg1, %c0_i32 : i32
    %c0_i32_3 = arith.constant 0 : i32
    %4 = arith.cmpi eq, %arg2, %c0_i32_3 : i32
    %5 = arith.andi %3, %4 : i1
    %6 = arith.extui %5 : i1 to i32
    %c0_i32_4 = arith.constant 0 : i32
    %7 = arith.cmpi ne, %6, %c0_i32_4 : i32
    scf.if %7 {
      %cst_8 = arith.constant 0.000000e+00 : f32
      %14 = vector.broadcast %cst_8 : f32 to vector<8x1xf32>
      %c0_9 = arith.constant 0 : index
      %c0_10 = arith.constant 0 : index
      %15 = vector.load %arg8[%c0_9, %c0_10] : memref<8x1xf32, #tpu.memory_space<vmem>>, vector<8x1xf32>
      tpu.vector_store %arg8[%c0_9, %c0_10], %14 {strides = array<i32>} : memref<8x1xf32, #tpu.memory_space<vmem>>, vector<8x1xf32>,
      %cst_11 = arith.constant 0.000000e+00 : f32
      %16 = vector.broadcast %cst_11 : f32 to vector<8x1xf32>
      %c0_12 = arith.constant 0 : index
      %c0_13 = arith.constant 0 : index
      %17 = vector.load %arg9[%c0_12, %c0_13] : memref<8x1xf32, #tpu.memory_space<vmem>>, vector<8x1xf32>
      tpu.vector_store %arg9[%c0_12, %c0_13], %16 {strides = array<i32>} : memref<8x1xf32, #tpu.memory_space<vmem>>, vector<8x1xf32>,
      %cst_14 = arith.constant 0.000000e+00 : bf16
      %18 = vector.broadcast %cst_14 : bf16 to vector<8x128xbf16>
      %c0_15 = arith.constant 0 : index
      %c0_16 = arith.constant 0 : index
      %19 = vector.load %arg7[%c0_15, %c0_16] : memref<8x128xbf16, #tpu.memory_space<vmem>>, vector<8x128xbf16>
      tpu.vector_store %arg7[%c0_15, %c0_16], %18 {strides = array<i32>} : memref<8x128xbf16, #tpu.memory_space<vmem>>, vector<8x128xbf16>,
    } else {
    }
    %c0_i32_5 = arith.constant 0 : i32
    %8 = arith.cmpi eq, %arg1, %c0_i32_5 : i32
    %9 = arith.extui %8 : i1 to i32
    %c0_i32_6 = arith.constant 0 : i32
    %10 = arith.cmpi ne, %9, %c0_i32_6 : i32
    scf.if %10 {
      %c0_8 = arith.constant 0 : index
      %c0_9 = arith.constant 0 : index
      %14 = vector.load %arg8[%c0_8, %c0_9] : memref<8x1xf32, #tpu.memory_space<vmem>>, vector<8x1xf32>
      %cst_10 = arith.constant dense<0.000000e+00> : vector<8xf32>
      %15 = vector.multi_reduction <add>, %2, %cst_10 [1] : vector<8x128xf32> to vector<8xf32>
      %16 = vector.shape_cast %15 : vector<8xf32> to vector<8x1xf32>
      %17 = arith.addf %14, %16 : vector<8x1xf32>
      %c0_11 = arith.constant 0 : index
      %c0_12 = arith.constant 0 : index
      %18 = vector.load %arg8[%c0_11, %c0_12] : memref<8x1xf32, #tpu.memory_space<vmem>>, vector<8x1xf32>
      tpu.vector_store %arg8[%c0_11, %c0_12], %17 {strides = array<i32>} : memref<8x1xf32, #tpu.memory_space<vmem>>, vector<8x1xf32>,
      %c0_13 = arith.constant 0 : index
      %c0_14 = arith.constant 0 : index
      %19 = vector.load %arg9[%c0_13, %c0_14] : memref<8x1xf32, #tpu.memory_space<vmem>>, vector<8x1xf32>
      %20 = arith.mulf %2, %2 : vector<8x128xf32>
      %cst_15 = arith.constant dense<0.000000e+00> : vector<8xf32>
      %21 = vector.multi_reduction <add>, %20, %cst_15 [1] : vector<8x128xf32> to vector<8xf32>
      %22 = vector.shape_cast %21 : vector<8xf32> to vector<8x1xf32>
      %23 = arith.addf %19, %22 : vector<8x1xf32>
      %c0_16 = arith.constant 0 : index
      %c0_17 = arith.constant 0 : index
      %24 = vector.load %arg9[%c0_16, %c0_17] : memref<8x1xf32, #tpu.memory_space<vmem>>, vector<8x1xf32>
      tpu.vector_store %arg9[%c0_16, %c0_17], %23 {strides = array<i32>} : memref<8x1xf32, #tpu.memory_space<vmem>>, vector<8x1xf32>,
    } else {
    }
    %c1_i32 = arith.constant 1 : i32
    %11 = arith.cmpi eq, %arg1, %c1_i32 : i32
    %12 = arith.extui %11 : i1 to i32
    %c0_i32_7 = arith.constant 0 : i32
    %13 = arith.cmpi ne, %12, %c0_i32_7 : i32
    scf.if %13 {
      %c0_8 = arith.constant 0 : index
      %c0_9 = arith.constant 0 : index
      %14 = vector.load %arg8[%c0_8, %c0_9] : memref<8x1xf32, #tpu.memory_space<vmem>>, vector<8x1xf32>
      %cst_10 = arith.constant 7.812500e-03 : f32
      %15 = vector.broadcast %cst_10 : f32 to vector<8x1xf32>
      %16 = arith.mulf %14, %15 : vector<8x1xf32>
      %c0_11 = arith.constant 0 : index
      %c0_12 = arith.constant 0 : index
      %17 = vector.load %arg9[%c0_11, %c0_12] : memref<8x1xf32, #tpu.memory_space<vmem>>, vector<8x1xf32>
      %cst_13 = arith.constant 7.812500e-03 : f32
      %18 = vector.broadcast %cst_13 : f32 to vector<8x1xf32>
      %19 = arith.mulf %17, %18 : vector<8x1xf32>
      %20 = arith.mulf %16, %16 : vector<8x1xf32>
      %21 = arith.subf %19, %20 : vector<8x1xf32>
      %cst_14 = arith.constant 0.000000e+00 : f32
      %22 = vector.broadcast %cst_14 : f32 to vector<8x1xf32>
      %23 = arith.maximumf %21, %22 : vector<8x1xf32>
      %c0_15 = arith.constant 0 : index
      %c0_16 = arith.constant 0 : index
      %24 = vector.load %arg5[%c0_15, %c0_16] : memref<8x1xf32, #tpu.memory_space<vmem>>, vector<8x1xf32>
      %cst_17 = arith.constant 9.99999974E-6 : f32
      %25 = vector.broadcast %cst_17 : f32 to vector<8x1xf32>
      %26 = arith.addf %23, %25 : vector<8x1xf32>
      %27 = math.rsqrt %26 : vector<8x1xf32>
      %28 = arith.mulf %24, %27 : vector<8x1xf32>
      %c0_18 = arith.constant 0 : index
      %c0_19 = arith.constant 0 : index
      %29 = vector.load %arg6[%c0_18, %c0_19] : memref<8x1xf32, #tpu.memory_space<vmem>>, vector<8x1xf32>
      %30 = arith.mulf %16, %28 : vector<8x1xf32>
      %31 = arith.subf %29, %30 : vector<8x1xf32>
      %32 = vector.broadcast %28 : vector<8x1xf32> to vector<8x128xf32>
      %33 = arith.mulf %2, %32 : vector<8x128xf32>
      %34 = vector.broadcast %31 : vector<8x1xf32> to vector<8x128xf32>
      %35 = arith.addf %33, %34 : vector<8x128xf32>
      %cst_20 = arith.constant 0.000000e+00 : f32
      %36 = vector.broadcast %cst_20 : f32 to vector<8x128xf32>
      %37 = arith.maximumf %35, %36 : vector<8x128xf32>
      %38 = arith.truncf %37 : vector<8x128xf32> to vector<8x128xbf16>
      %c0_21 = arith.constant 0 : index
      %c0_22 = arith.constant 0 : index
      %39 = vector.load %arg7[%c0_21, %c0_22] : memref<8x128xbf16, #tpu.memory_space<vmem>>, vector<8x128xbf16>
      tpu.vector_store %arg7[%c0_21, %c0_22], %38 {strides = array<i32>} : memref<8x128xbf16, #tpu.memory_space<vmem>>, vector<8x128xbf16>,
    } else {
    }
    return
  }
  func.func @transform_0(%arg0: i32, %arg1: i32, %arg2: i32) -> (i32, i32) {
    %c0_i32 = arith.constant 0 : i32
    %c0_i32_0 = arith.constant 0 : i32
    return %c0_i32, %arg2 : i32, i32
  }
  func.func @transform_1(%arg0: i32, %arg1: i32, %arg2: i32) -> (i32, i32) {
    %c0_i32 = arith.constant 0 : i32
    %c0_i32_0 = arith.constant 0 : i32
    return %arg0, %c0_i32 : i32, i32
  }
  func.func @transform_2(%arg0: i32, %arg1: i32, %arg2: i32) -> (i32, i32) {
    %c0_i32 = arith.constant 0 : i32
    %c0_i32_0 = arith.constant 0 : i32
    return %arg0, %c0_i32 : i32, i32
  }
  func.func @transform_3(%arg0: i32, %arg1: i32, %arg2: i32) -> (i32, i32) {
    %c0_i32 = arith.constant 0 : i32
    %c0_i32_0 = arith.constant 0 : i32
    return %arg0, %c0_i32 : i32, i32
  }
  func.func @transform_4(%arg0: i32, %arg1: i32, %arg2: i32) -> (i32, i32) {
    %0 = arith.muli %arg2, %arg1 : i32
    %c0_i32 = arith.constant 0 : i32
    return %arg0, %0 : i32, i32
  }
}

</mosaic_0001>

<llo_original>
// kernel: tpu_custom_call.1
$region0: #{tpu_custom_call.1}
  #allocation0 [shape = 'u32[]', space=smem, size = 0x4, offset = 0x4, fixed_abs, tag = 'smem constant byte address 0x4 - core index']
  #allocation1 [shape = 'u32[144,128]{1,0:T(1,128)}', space=vmem, size = 0x12000, scoped, tag = 'internal scratch']
  #allocation2 [shape = 'f32[8,1]{1,0:T(8,128)}', space=vmem, size = 0x1000, scoped, tag = 'scratch operand']
  #allocation3 [shape = 'f32[8,1]{1,0:T(8,128)}', space=vmem, size = 0x1000, scoped, tag = 'scratch operand']
  %s0 = inlined_call_operand.hbm [shape: bf16[36,128], index: 0, kind: input, shape index: {}]
  %s1 = inlined_call_operand.vmem [shape: bf16[8,36], index: 1, kind: input, shape index: {}]
  %s2 = inlined_call_operand.vmem [shape: f32[8,1], index: 2, kind: input, shape index: {}]
  %s3 = inlined_call_operand.vmem [shape: f32[8,1], index: 3, kind: input, shape index: {}]
  %s4 = inlined_call_operand.hbm [shape: bf16[8,128], index: 4, kind: output, shape index: {}]
  %s5 = sld [smem:[#allocation0]]
  $region65: #{tpu_custom_call.1} parent=0
    _
  %s7 = ssub.s32 1, %s5
  %s8 = scalar_select 0, %s7, %s5
  $region1: #{tpu_custom_call.1} parent=0
    #allocation4 [shape = 'u8[10240]{0}', space=vmem, size = 0x2800, scoped, tag = 'input window, operand 0, single buffered']
    #allocation5 [shape = 's32[2]{0}', space=sflag, size = 0x8, scoped, tag = 'scoped memory for tpu_custom_call.1']
    #allocation6 [shape = 's32[2]{0}', space=sflag, size = 0x8, scoped, tag = 'scoped memory for tpu_custom_call.1']
    #allocation7 [shape = 'u8[4096]{0}', space=vmem, size = 0x1000, scoped, tag = 'output window, operand 0']
    %9 = vsyncpa [#allocation5], 0
    %10 = vsyncpa [#allocation6], 0
    %s11 = scalar_lea.sflag [#allocation6], 1
    %12 = vsyncpa %s11, 0
    loop: start=0, step=1, limit=4
    $region2: #{tpu_custom_call.1} parent=1 // loop_pre_header
      _
    $region3: #{tpu_custom_call.1} parent=1 // loop_header
      %s14 = sphi 0, %s18
      %p15 = scmp.ge.s32.totalorder %s14, 4
      %s21 = sphi 0, %s40
      %s22 = sphi 0, %s36
      %s23 = sphi 0, %s32
      %s24 = sphi 0, %s21
      %s25 = sphi 0, %s22
      %s26 = sphi 0, %s23
      %s27 = sphi 0, %s24
      %s28 = sphi 0, %s25
      %s29 = sphi 0, %s26
      %s43 = sphi 0, %s45
      %s46 = sphi 0, %s43
      %s47 = sphi 0, %s46
      %s63 = sphi 0, %s47
      %s69 = sphi 0, %s71
      %s72 = sphi 0, %s69
      %s73 = sphi 0, %s72
      %s89 = sphi 0, %s73
      %s95 = sphi 0, %s97
      %s98 = sphi 0, %s95
      %s99 = sphi 0, %s98
      %s115 = sphi 0, %s99
      %s121 = sphi 0, %s123
      %s124 = sphi 0, %s121
      %s125 = sphi 0, %s124
      %s141 = sphi 0, %s125
      %s151 = sphi 0, %s153
      %s154 = sphi 0, %s151
      %s155 = sphi 0, %s154
      %s171 = sphi 0, %s155
    $region4: #{tpu_custom_call.1} parent=1 // loop_header_branch
      %17 = sbr.rel (%p15) target = $region8
    $region5: #{tpu_custom_call.1} parent=1 // loop_body
      %s19 = ssub.s32 %s14, 1
      %s20 = ssub.s32 %s14, 2
      %s30 = sadd.s32 1, %s23
      %p31 = scmp.ge.s32.totalorder %s30, 1
      %s32 = scalar_select %p31, 0, %s30
      %s33 = sadd.s32 1, %s22
      %s34 = scalar_select %p31, %s33, %s22
      %p35 = scmp.ge.s32.totalorder %s34, 2
      %s36 = scalar_select %p35, 0, %s34
      %s37 = sadd.s32 1, %s21
      %s38 = scalar_select %p35, %s37, %s21
      %p39 = scmp.ge.s32.totalorder %s38, 1
      %s40 = scalar_select %p39, 0, %s38
      %s41 = ssub.s32 %s23, %s32
      %p42 = scmp.eq.s32.totalorder %s41, 0
      %s44 = sadd.s32 %s43, 1
      %s45 = scalar_select %p42, %s43, %s44
      %p48 = pneg %p42
      %p49 = scmp.eq.s32.totalorder %s14, 1
      %p50 = por %p48, %p49
      %p51 = scmp.ne.s32.totalorder %s43, %s46
      %p52 = scmp.eq.s32.totalorder %s14, 0
      %p53 = por %p51, %p52
      %p54 = scmp.ne.s32.totalorder %s43, %s46
      %p55 = scmp.eq.s32.totalorder %s19, 1
      %p56 = por %p54, %p55
      %p57 = scmp.ne.s32.totalorder %s46, %s47
      %p58 = scmp.eq.s32.totalorder %s19, 0
      %p59 = por %p57, %p58
      %p60 = scmp.ne.s32.totalorder %s46, %s47
      %p61 = scmp.eq.s32.totalorder %s20, 1
      %p62 = por %p60, %p61
      %p64 = scmp.ne.s32.totalorder %s47, %s63
      %p65 = scmp.eq.s32.totalorder %s20, 0
      %p66 = por %p64, %p65
      %s67 = ssub.s32 %s21, %s40
      %p68 = scmp.eq.s32.totalorder %s67, 0
      %s70 = sadd.s32 %s69, 1
      %s71 = scalar_select %p68, %s69, %s70
      %p74 = pneg %p68
      %p75 = scmp.eq.s32.totalorder %s14, 1
      %p76 = por %p74, %p75
      %p77 = scmp.ne.s32.totalorder %s69, %s72
      %p78 = scmp.eq.s32.totalorder %s14, 0
      %p79 = por %p77, %p78
      %p80 = scmp.ne.s32.totalorder %s69, %s72
      %p81 = scmp.eq.s32.totalorder %s19, 1
      %p82 = por %p80, %p81
      %p83 = scmp.ne.s32.totalorder %s72, %s73
      %p84 = scmp.eq.s32.totalorder %s19, 0
      %p85 = por %p83, %p84
      %p86 = scmp.ne.s32.totalorder %s72, %s73
      %p87 = scmp.eq.s32.totalorder %s20, 1
      %p88 = por %p86, %p87
      %p90 = scmp.ne.s32.totalorder %s73, %s89
      %p91 = scmp.eq.s32.totalorder %s20, 0
      %p92 = por %p90, %p91
      %s93 = ssub.s32 %s21, %s40
      %p94 = scmp.eq.s32.totalorder %s93, 0
      %s96 = sadd.s32 %s95, 1
      %s97 = scalar_select %p94, %s95, %s96
      %p100 = pneg %p94
      %p101 = scmp.eq.s32.totalorder %s14, 1
      %p102 = por %p100, %p101
      %p103 = scmp.ne.s32.totalorder %s95, %s98
      %p104 = scmp.eq.s32.totalorder %s14, 0
      %p105 = por %p103, %p104
      %p106 = scmp.ne.s32.totalorder %s95, %s98
      %p107 = scmp.eq.s32.totalorder %s19, 1
      %p108 = por %p106, %p107
      %p109 = scmp.ne.s32.totalorder %s98, %s99
      %p110 = scmp.eq.s32.totalorder %s19, 0
      %p111 = por %p109, %p110
      %p112 = scmp.ne.s32.totalorder %s98, %s99
      %p113 = scmp.eq.s32.totalorder %s20, 1
      %p114 = por %p112, %p113
      %p116 = scmp.ne.s32.totalorder %s99, %s115
      %p117 = scmp.eq.s32.totalorder %s20, 0
      %p118 = por %p116, %p117
      %s119 = ssub.s32 %s21, %s40
      %p120 = scmp.eq.s32.totalorder %s119, 0
      %s122 = sadd.s32 %s121, 1
      %s123 = scalar_select %p120, %s121, %s122
      %p126 = pneg %p120
      %p127 = scmp.eq.s32.totalorder %s14, 1
      %p128 = por %p126, %p127
      %p129 = scmp.ne.s32.totalorder %s121, %s124
      %p130 = scmp.eq.s32.totalorder %s14, 0
      %p131 = por %p129, %p130
      %p132 = scmp.ne.s32.totalorder %s121, %s124
      %p133 = scmp.eq.s32.totalorder %s19, 1
      %p134 = por %p132, %p133
      %p135 = scmp.ne.s32.totalorder %s124, %s125
      %p136 = scmp.eq.s32.totalorder %s19, 0
      %p137 = por %p135, %p136
      %p138 = scmp.ne.s32.totalorder %s124, %s125
      %p139 = scmp.eq.s32.totalorder %s20, 1
      %p140 = por %p138, %p139
      %p142 = scmp.ne.s32.totalorder %s125, %s141
      %p143 = scmp.eq.s32.totalorder %s20, 0
      %p144 = por %p142, %p143
      %s145 = smul.u32 %s23, %s22
      %s146 = smul.u32 %s32, %s36
      %s147 = ssub.s32 %s21, %s40
      %s148 = ssub.s32 %s145, %s146
      %s149 = sor.u32 %s147, %s148
      %p150 = scmp.eq.s32.totalorder %s149, 0
      %s152 = sadd.s32 %s151, 1
      %s153 = scalar_select %p150, %s151, %s152
      %p156 = pneg %p150
      %p157 = scmp.eq.s32.totalorder %s14, 1
      %p158 = por %p156, %p157
      %p159 = scmp.ne.s32.totalorder %s151, %s154
      %p160 = scmp.eq.s32.totalorder %s14, 0
      %p161 = por %p159, %p160
      %p162 = scmp.ne.s32.totalorder %s151, %s154
      %p163 = scmp.eq.s32.totalorder %s19, 1
      %p164 = por %p162, %p163
      %p165 = scmp.ne.s32.totalorder %s154, %s155
      %p166 = scmp.eq.s32.totalorder %s19, 0
      %p167 = por %p165, %p166
      %p168 = scmp.ne.s32.totalorder %s154, %s155
      %p169 = scmp.eq.s32.totalorder %s20, 1
      %p170 = por %p168, %p169
      %p172 = scmp.ne.s32.totalorder %s155, %s171
      %p173 = scmp.eq.s32.totalorder %s20, 0
      %p174 = por %p172, %p173
      %p175 = scmp.le.s32.totalorder 1, %s14
      %p176 = scmp.lt.s32.totalorder %s14, 3
      %p177 = pnand %p175, %p176
      %p178 = pneg %p177
      // Predicated region
      $region9: #{tpu_custom_call.1} parent=5 // pred_check
        _
      $region10: #{tpu_custom_call.1} parent=5 // pred_check_branch
        %180 = sbr.rel (%p177) target = $region12
      $region11: #{tpu_custom_call.1} parent=5 // pred_region
        %s181 = ssub.s32 %s14, 1
        // Predicated region
        $region13: #{tpu_custom_call.1} parent=11 // pred_check
          %p182 = pneg %p59
        $region14: #{tpu_custom_call.1} parent=11 // pred_check_branch
          %184 = sbr.rel (%p182) target = $region16
        $region15: #{tpu_custom_call.1} parent=11 // pred_region
          %s186 = ssub.s32 320, 320
          %187 = vsyncadd [#allocation5], %s186
          %s188 = smul.addr %s26, 64
          %s189 = scalar_lea.hbm %s0, %s188
          %s190 = sshll.u32 [#allocation4], 4
          %s191 = int_to_ptr.vmem [resolvable:$true] %s190
          %196 = dma.hbm_to_vmem [thread:$0]  %s189, 320, %s191, [#allocation5], 64, 64, 4
        $region16: #{tpu_custom_call.1} parent=11 // pred_fallthru
          _
        // Predicated region
        $region17: #{tpu_custom_call.1} parent=11 // pred_check
          %p197 = pneg %p85
        $region18: #{tpu_custom_call.1} parent=11 // pred_check_branch
          %199 = sbr.rel (%p197) target = $region20
        $region19: #{tpu_custom_call.1} parent=11 // pred_region
          %p200 = scmp.lt.s32.totalorder %s24, 0
          %s201 = scalar_select %p200, %s24, 0
          %s202 = smul.addr %s201, 4
          %s203 = scalar_lea.vmem %s1, %s202
        $region20: #{tpu_custom_call.1} parent=11 // pred_fallthru
          _
        // Predicated region
        $region21: #{tpu_custom_call.1} parent=11 // pred_check
          %p204 = pneg %p111
        $region22: #{tpu_custom_call.1} parent=11 // pred_check_branch
          %206 = sbr.rel (%p204) target = $region24
        $region23: #{tpu_custom_call.1} parent=11 // pred_region
          %p207 = scmp.lt.s32.totalorder %s24, 0
          %s208 = scalar_select %p207, %s24, 0
          %s209 = smul.addr %s208, 8
          %s210 = scalar_lea.vmem %s2, %s209
        $region24: #{tpu_custom_call.1} parent=11 // pred_fallthru
          _
        // Predicated region
        $region25: #{tpu_custom_call.1} parent=11 // pred_check
          %p211 = pneg %p137
        $region26: #{tpu_custom_call.1} parent=11 // pred_check_branch
          %213 = sbr.rel (%p211) target = $region28
        $region27: #{tpu_custom_call.1} parent=11 // pred_region
          %p214 = scmp.lt.s32.totalorder %s24, 0
          %s215 = scalar_select %p214, %s24, 0
          %s216 = smul.addr %s215, 8
          %s217 = scalar_lea.vmem %s3, %s216
        $region28: #{tpu_custom_call.1} parent=11 // pred_fallthru
          _
      $region12: #{tpu_custom_call.1} parent=5 // pred_fallthru
        _
      %p218 = scmp.lt.s32.totalorder %s14, 2
      // Predicated region
      $region29: #{tpu_custom_call.1} parent=5 // pred_check
        %p219 = pneg %p218
      $region30: #{tpu_custom_call.1} parent=5 // pred_check_branch
        %221 = sbr.rel (%p219) target = $region32
      $region31: #{tpu_custom_call.1} parent=5 // pred_region
        _
      $region32: #{tpu_custom_call.1} parent=5 // pred_fallthru
        _
      %p222 = scmp.le.s32.totalorder 1, %s14
      %p223 = scmp.lt.s32.totalorder %s14, 3
      %p224 = pnand %p222, %p223
      %p225 = pneg %p224
      // Predicated region
      $region33: #{tpu_custom_call.1} parent=5 // pred_check
        _
      $region34: #{tpu_custom_call.1} parent=5 // pred_check_branch
        %227 = sbr.rel (%p224) target = $region36
      $region35: #{tpu_custom_call.1} parent=5 // pred_region
        %s228 = ssub.s32 %s14, 1
        // Predicated region
        $region37: #{tpu_custom_call.1} parent=35 // pred_check
          %p229 = pneg %p59
        $region38: #{tpu_custom_call.1} parent=35 // pred_check_branch
          %231 = sbr.rel (%p229) target = $region40
        $region39: #{tpu_custom_call.1} parent=35 // pred_region
          %232 = dma.done [#allocation5], 320
        $region40: #{tpu_custom_call.1} parent=35 // pred_fallthru
          _
        %p233 = pneg %p59
        %p234 = pneg %p56
        %p235 = scmp.lt.s32.totalorder %s24, 0
        %s236 = scalar_select %p235, %s24, 0
        %s237 = smul.addr %s236, 4
        %s238 = scalar_lea.vmem %s1, %s237
        %p239 = pneg %p85
        %p240 = pneg %p82
        %p241 = scmp.lt.s32.totalorder %s24, 0
        %s242 = scalar_select %p241, %s24, 0
        %s243 = smul.addr %s242, 8
        %s244 = scalar_lea.vmem %s2, %s243
        %p245 = pneg %p111
        %p246 = pneg %p108
        %p247 = scmp.lt.s32.totalorder %s24, 0
        %s248 = scalar_select %p247, %s24, 0
        %s249 = smul.addr %s248, 8
        %s250 = scalar_lea.vmem %s3, %s249
        %p251 = pneg %p137
        %p252 = pneg %p134
        %p253 = pneg %p167
        %p254 = pneg %p164
        %s255 = sand.u32 %s154, 1
        %s256 = scalar_lea.sflag [#allocation6], %s255
        %s257 = sand.u32 %s154, 1
        %s258 = smul.addr %s257, 4
        %s259 = scalar_lea.vmem [#allocation7], %s258
        %p260 = scmp.lt.s32.totalorder %s24, 0
        %s261 = scalar_select %p260, %s24, 0
        %s262 = smul.addr %s261, 4
        %s263 = scalar_lea.vmem %s1, %s262
        %p264 = scmp.lt.s32.totalorder %s24, 0
        %s265 = scalar_select %p264, %s24, 0
        %s266 = smul.addr %s265, 8
        %s267 = scalar_lea.vmem %s2, %s266
        %p268 = scmp.lt.s32.totalorder %s24, 0
        %s269 = scalar_select %p268, %s24, 0
        %s270 = smul.addr %s269, 8
        %s271 = scalar_lea.vmem %s3, %s270
        %s272 = smul.u32 %s26, %s25
        %v274 = vld [vmem:[%s263] sm:$0xf]
        %v275 = vld [vmem:[#allocation4] sm:$0xf]
        %v276 = vld [vmem:[#allocation4 + $0x4] sm:$0xf]
        %v277 = vld [vmem:[#allocation4 + $0x8] sm:$0xf]
        %v278 = vld [vmem:[#allocation4 + $0xc] sm:$0xf]
        %v279 = vld [vmem:[#allocation4 + $0x10] sm:$0x3]
        %v285 = vunpack.c.l.b16 %v275
        %v286 = vunpack.c.l.b16 %v276
        %v287 = vunpack.c.l.b16 %v277
        %v288 = vunpack.c.l.b16 %v278
        %v289 = vunpack.c.l.b16 %v279
        %v290 = vpack.c.b16 %v286, %v285
        %v291 = vpack.c.b16 %v288, %v287
        %v292 = vpack.c.b16 %v289, %v289
        %vm295 = vcmask 293888
        %v297 = vsel %vm295, %v274, 0
        %vm299 = vcmask 1041408
        %v301 = vsel %vm299, %v292, 0
        %303 = vmatprep.subr.bf16.mxu0 0
        %304 = vmatpush1.bf16.msra.mxu0 %v290
        %305 = vmatprep.subr.bf16.mxu0 0
        %306 = vmatpush1.bf16.msra.mxu0 %v291
        %307 = vmatprep.subr.bf16.mxu0 0
        %308 = vmatpush1.bf16.msra.mxu0 %v301
        %309 = vmatprep.subr.bf16.mxu0 0
        %310 = vmatpush1.bf16.msra.mxu0 0
        %311 = vmatprep.subr.bf16.mxu0 0
        %312 = vmatpush1.bf16.msra.mxu0 0
        %313 = vmatprep.subr.bf16.mxu0 0
        %314 = vmatpush1.bf16.msra.mxu0 0
        %315 = vmatprep.subr.bf16.mxu0 0
        %316 = vmatpush1.bf16.msra.mxu0 0
        %317 = vmatprep.subr.bf16.mxu0 0
        %318 = vmatpush1.bf16.msra.mxu0 0
        %319 = vmatprep.subr.bf16.mxu0 0
        %320 = vmatpush1.bf16.msra.mxu0 0
        %321 = vmatprep.subr.bf16.mxu0 0
        %322 = vmatpush1.bf16.msra.mxu0 0
        %323 = vmatprep.subr.bf16.mxu0 0
        %324 = vmatpush1.bf16.msra.mxu0 0
        %325 = vmatprep.subr.bf16.mxu0 0
        %326 = vmatpush1.bf16.msra.mxu0 0
        %327 = vmatprep.subr.bf16.mxu0 0
        %328 = vmatpush1.bf16.msra.mxu0 0
        %329 = vmatprep.subr.bf16.mxu0 0
        %330 = vmatpush1.bf16.msra.mxu0 0
        %331 = vmatprep.subr.bf16.mxu0 0
        %332 = vmatpush1.bf16.msra.mxu0 0
        %333 = vmatprep.subr.bf16.mxu0 0
        %334 = vmatpush1.bf16.msra.mxu0 0
        %335 = vmatprep.mubr.bf16.mxu0 0
        %336 = vmatmul.mubr.bf16.gmra.mrb[0].mxu0 %v297
        %v337 = vpop.f32.mrb[0].mxu0
        %v338 = vadd.f32 0.0, %v337
        %v339 = vpop.f32.mrb[0].mxu0
        %v340 = vpop.f32.mrb[0].mxu0
        %v341 = vpop.f32.mrb[0].mxu0
        %342 = vdwg.mxu0
        %p343 = scmp.eq.s32.totalorder %s25, 0
        %p344 = scmp.eq.s32.totalorder %s26, 0
        %p345 = pnand %p343, %p344
        %p346 = pneg %p345
        // Predicated region
        $region41: #{tpu_custom_call.1} parent=35 // pred_check
          _
        $region42: #{tpu_custom_call.1} parent=35 // pred_check_branch
          %348 = sbr.rel (%p345) target = $region44
        $region43: #{tpu_custom_call.1} parent=35 // pred_region
          %vm349 = vcmask 7168
          %350 = vst.msk [vmem:[#allocation2] sm:$0xff] %vm349, 0.0
          %351 = vst.msk [vmem:[#allocation3] sm:$0xff] %vm349, 0.0
          %352 = vst [vmem:[%s259] sm:$0xf] 0
        $region44: #{tpu_custom_call.1} parent=35 // pred_fallthru
          _
        // Predicated region
        $region45: #{tpu_custom_call.1} parent=35 // pred_check
          %p353 = pneg %p343
        $region46: #{tpu_custom_call.1} parent=35 // pred_check_branch
          %355 = sbr.rel (%p353) target = $region48
        $region47: #{tpu_custom_call.1} parent=35 // pred_region
          %v356 = vld [vmem:[#allocation2] sm:$0xff]
          %357 = vadd.xlane.f32.xlu0 %v338
          %v358 = vpop.xlane.xlu0 %357
          %v359 = vadd.f32 %v356, %v358
          %vm360 = vcmask 7168
          %361 = vst.msk [vmem:[#allocation2] sm:$0xff] %vm360, %v359
          %v362 = vld [vmem:[#allocation3] sm:$0xff]
          %v363 = vmul.f32 %v338, %v338
          %364 = vadd.xlane.f32.xlu0 %v363
          %v365 = vpop.xlane.xlu0 %364
          %v366 = vadd.f32 %v362, %v365
          %367 = vst.msk [vmem:[#allocation3] sm:$0xff] %vm360, %v366
        $region48: #{tpu_custom_call.1} parent=35 // pred_fallthru
          _
        %p368 = scmp.eq.s32.totalorder %s25, 1
        // Predicated region
        $region49: #{tpu_custom_call.1} parent=35 // pred_check
          %p369 = pneg %p368
        $region50: #{tpu_custom_call.1} parent=35 // pred_check_branch
          %371 = sbr.rel (%p369) target = $region52
        $region51: #{tpu_custom_call.1} parent=35 // pred_region
          %v372 = vld [vmem:[#allocation2] sm:$0xff]
          %v373 = vmul.f32 %v372, 0.0078125
          %v374 = vld [vmem:[#allocation3] sm:$0xff]
          %v375 = vmul.f32 %v374, 0.0078125
          %v376 = vmul.f32 %v373, %v373
          %v377 = vsub.f32 %v375, %v376
          %v378 = vmax.f32 %v377, 0.0
          %v379 = vld [vmem:[%s267] sm:$0xff]
          %v380 = vadd.f32 %v378, 1e-05
          %v381 = vrsqrt.pop %v380
          %v382 = vmul.f32 %v379, %v381
          %v383 = vld [vmem:[%s271] sm:$0xff]
          %v384 = vmul.f32 %v373, %v382
          %v385 = vsub.f32 %v383, %v384
          %387 = vset.pattern.permute.xlu0 0
          %388 = vperm.xlu0 %387, %v382
          %v389 = vpop.permute.xlu0 %388
          %v391 = vmul.f32 %v338, %v389
          %393 = vset.pattern.permute.xlu0 0
          %394 = vperm.xlu0 %393, %v385
          %v395 = vpop.permute.xlu0 %394
          %v397 = vadd.f32 %v391, %v395
          %v398 = vmax.f32 %v397, 0.0
          %v399 = vpack.c.bf16 %v398, %v398
          %400 = vst [vmem:[%s259] sm:$0xf] %v399
        $region52: #{tpu_custom_call.1} parent=35 // pred_fallthru
          _
        %s401 = sand.u32 %s154, 1
        %s402 = scalar_lea.sflag [#allocation6], %s401
        %s403 = sand.u32 %s154, 1
        %s404 = smul.addr %s403, 4
        %s405 = scalar_lea.vmem [#allocation7], %s404
        // Predicated region
        $region53: #{tpu_custom_call.1} parent=35 // pred_check
          %p406 = pneg %p164
        $region54: #{tpu_custom_call.1} parent=35 // pred_check_branch
          %408 = sbr.rel (%p406) target = $region56
        $region55: #{tpu_custom_call.1} parent=35 // pred_region
          %s409 = smul.u32 %s26, %s25
          %s411 = ssub.s32 64, 64
          %412 = vsyncadd %s402, %s411
          %s413 = sadd.s32 %s409, %s24
          %s414 = smul.addr %s413, 64
          %s415 = scalar_lea.hbm %s4, %s414
          %s417 = sshll.u32 %s405, 4
          %s418 = int_to_ptr.vmem [resolvable:$true] %s417
          %420 = dma.vmem_to_hbm [thread:$0]  %s418, 64, %s415, %s402
        $region56: #{tpu_custom_call.1} parent=35 // pred_fallthru
          _
      $region36: #{tpu_custom_call.1} parent=5 // pred_fallthru
        _
      %p421 = scmp.le.s32.totalorder 2, %s14
      // Predicated region
      $region57: #{tpu_custom_call.1} parent=5 // pred_check
        %p422 = pneg %p421
      $region58: #{tpu_custom_call.1} parent=5 // pred_check_branch
        %424 = sbr.rel (%p422) target = $region60
      $region59: #{tpu_custom_call.1} parent=5 // pred_region
        %s425 = ssub.s32 %s14, 2
        // Predicated region
        $region61: #{tpu_custom_call.1} parent=59 // pred_check
          %p426 = pneg %p170
        $region62: #{tpu_custom_call.1} parent=59 // pred_check_branch
          %428 = sbr.rel (%p426) target = $region64
        $region63: #{tpu_custom_call.1} parent=59 // pred_region
          %s429 = sand.u32 %s155, 1
          %s430 = scalar_lea.sflag [#allocation6], %s429
          %s431 = sand.u32 %s155, 1
          %s432 = smul.addr %s431, 4
          %s433 = scalar_lea.vmem [#allocation7], %s432
          %434 = dma.done %s430, 64
        $region64: #{tpu_custom_call.1} parent=59 // pred_fallthru
          _
      $region60: #{tpu_custom_call.1} parent=5 // pred_fallthru
        _
    $region6: #{tpu_custom_call.1} parent=1 // loop_footer
      %s18 = sadd.s32 1, %s14
    $region7: #{tpu_custom_call.1} parent=1 // loop_footer_branch
      %13 = sbr.rel target = $region3
    $region8: #{tpu_custom_call.1} parent=1 // loop_exit
      _
    %435 = vsyncpa [#allocation5], 1
    %s436 = scalar_lea.sflag [#allocation5], 1
    %437 = vsyncpa %s436, 1
    %438 = vsyncpa [#allocation6], 1
    %s439 = scalar_lea.sflag [#allocation6], 1
    %440 = vsyncpa %s439, 1

</llo_original>
